<compile_context>
chip_gen: v6e
topology: v6e:2x2x1
jax: 0.10.0
libtpu: 0.0.40
codegen_flags: <defaults>
</compile_context>

<pallas_src>
import functools

import jax
import jax.numpy as jnp
from jax.experimental import pallas as pl
from jax.experimental.pallas import tpu as pltpu


# ---------------------------------------------------------------------------
# Kernel
# ---------------------------------------------------------------------------
def _biresnet_kernel(nq_real,
                     v_ref, q_ref, att_ref,
                     wv_ref, wq_ref, wp_ref,
                     bv_ref, bq_ref, bp_ref,
                     o_ref, q_acc):
    """One (batch-tile, glimpse) grid step.

    The glimpse axis is an 'arbitrary' reduction axis: the question embedding
    is carried across it in the f32 VMEM scratch `q_acc`, and the output is
    written only on the last glimpse.
    """
    g = pl.program_id(1)
    cdt = wv_ref.dtype                       # MXU operand (compute) dtype
    tb, nv, vd = v_ref.shape                 # NV already padded to a mult. of 8
    nq = q_ref.shape[1]                      # NQ already padded to a mult. of 8
    hid = q_acc.shape[2]

    # Initialize the q carry for this batch tile on the first glimpse.
    # q_ref is kept f32 in the wrapper so the residual carry starts exact.
    @pl.when(g == 0)
    def _():
        q_acc[...] = q_ref[...].astype(jnp.float32)

    # BCNet.v_net : Linear + ReLU, one (TB*NV, VD) @ (VD, H) MXU matmul.
    v2 = v_ref[...].reshape(tb * nv, vd)                       # free: nv % 8 == 0
    vg = jnp.maximum(
        jnp.dot(v2, wv_ref[...], preferred_element_type=jnp.float32)
        + bv_ref[g], 0.0)                                      # (TB*NV, H) f32

    # BCNet.q_net : Linear + ReLU on the carried q, (TB*NQ, H) @ (H, H).
    q2 = q_acc[...].reshape(tb * nq, hid).astype(cdt)
    qg = jnp.maximum(
        jnp.dot(q2, wq_ref[...], preferred_element_type=jnp.float32)
        + bq_ref[g], 0.0)                                      # (TB*NQ, H) f32
    qg = qg.reshape(tb, nq, hid)

    # att was pre-transposed to (B, G, NQ, NV) and zero-padded in the wrapper,
    # so padded v / q positions contribute nothing to the bilinear sum.
    att = att_ref[...]                                         # (TB, NQ, NV) cdt
    m = jnp.einsum('bqi,bih->bqh', att, vg.reshape(tb, nv, hid).astype(cdt),
                   preferred_element_type=jnp.float32)         # (TB, NQ, H) f32
    logits = jnp.sum(m * qg, axis=1)                           # (TB, H) f32

    # q_prj[g] : Linear (no activation), residual broadcast over NQ.
    proj = (jnp.dot(logits.astype(cdt), wp_ref[...],
                    preferred_element_type=jnp.float32)
            + bp_ref[g])                                       # (TB, H) f32
    q_acc[...] = q_acc[...] + proj[:, None, :]

    # Final glimpse: reduce over the *real* question positions and write out.
    @pl.when(g == pl.num_programs(1) - 1)
    def _():
        acc = q_acc[...]
        if nq_real != nq:                                      # static branch
            row = jax.lax.broadcasted_iota(jnp.int32, (1, nq, 1), 1)
            acc = jnp.where(row < nq_real, acc, 0.0)
        o_ref[...] = jnp.sum(acc, axis=1).astype(o_ref.dtype)


# ---------------------------------------------------------------------------
# Wrapper helpers
# ---------------------------------------------------------------------------
def _pad_to(x, axis, multiple):
    size = x.shape[axis]
    pad = (-size) % multiple
    if pad == 0:
        return x
    widths = [(0, 0)] * x.ndim
    widths[axis] = (0, pad)
    return jnp.pad(x, widths)


def prepare_params(params, compute_dtype=jnp.bfloat16):
    """One-time weight prep: transpose to in-features-first and cast.

    Do this once per set of weights, OUTSIDE the per-forward hot path
    (hoists the XLA transpose + cast over all G*(VD*H + 2*H*H) elements).
    """
    return {
        "wv_t": jnp.swapaxes(params["wv"], 1, 2).astype(compute_dtype),  # (G, VD, H)
        "wq_t": jnp.swapaxes(params["wq"], 1, 2).astype(compute_dtype),  # (G, H, H)
        "wp_t": jnp.swapaxes(params["wp"], 1, 2).astype(compute_dtype),  # (G, H, H)
        "bv": params["bv"].astype(jnp.float32),                          # (G, 1, H)
        "bq": params["bq"].astype(jnp.float32),
        "bp": params["bp"].astype(jnp.float32),
    }


def _footprint_bytes(tb, nvp, nqp, vd, h, g, cbytes, obytes):
    """Approximate per-step VMEM footprint (double-buffered pipeline blocks)."""
    v_blk = tb * nvp * vd * cbytes
    q_blk = tb * nqp * h * 4                   # q kept f32 for the carry init
    a_blk = tb * nqp * nvp * cbytes
    w_blk = (vd * h + 2 * h * h) * cbytes
    o_blk = tb * h * obytes
    bias = 3 * g * h * 4                       # resident, tiny
    scratch = tb * nqp * h * 4                 # f32 q carry
    return 2 * (v_blk + q_blk + a_blk + w_blk + o_blk + bias) + scratch


def _pick_batch_tile(b, fits):
    """Largest divisor of B that keeps the (TB, H) output block legal
    (TB == B or TB % 8 == 0), fits the VMEM budget, and preferably leaves
    NB = B // TB >= 2 so the 'parallel' axis feeds both TCs on v7x."""
    cands = [t for t in range(b, 0, -1) if b % t == 0 and (t == b or t % 8 == 0)]
    fitting = [t for t in cands if fits(t)]
    if not fitting:
        return cands[-1]
    multi = [t for t in fitting if b // t >= 2]
    return multi[0] if multi else fitting[0]


def _default_vmem_budget():
    """~3/4 of per-core VMEM so the compiler keeps headroom for its own
    scratch / semaphores / DMA descriptors.  48 MiB on v7x (64 MiB/core) and
    unknown chips; 96 MiB on 128-MiB-VMEM generations (v4/v5e/v6e)."""
    try:
        kind = jax.devices()[0].device_kind.lower()
    except Exception:
        kind = ""
    if any(t in kind for t in ("v4", "v5", "v6")):
        return 96 << 20
    return 48 << 20


# ---------------------------------------------------------------------------
# Forward
# ---------------------------------------------------------------------------
def biresnet_forward(v_emb, q_emb, att_p, prepared, *, batch_tile=None,
                     vmem_budget_bytes=None):
    """prepared: output of prepare_params() (pre-transposed / pre-cast weights)."""
    B, NV, VD = v_emb.shape
    _, NQ, H = q_emb.shape
    G = att_p.shape[1]
    out_dtype = q_emb.dtype
    cdt = prepared["wv_t"].dtype
    cbytes = jnp.dtype(cdt).itemsize
    obytes = jnp.dtype(out_dtype).itemsize

    # Zero-pad NV / NQ to multiples of 8 so the in-kernel flattens are free and
    # the bilinear contraction runs on aligned tiles.  Attention is zero-padded
    # too, so padded positions contribute nothing.
    v_p = _pad_to(v_emb, 1, 8).astype(cdt)                    # (B, NVp, VD)
    q_p = _pad_to(q_emb.astype(jnp.float32), 1, 8)            # (B, NQp, H) f32
    att_t = jnp.swapaxes(att_p, 2, 3)                         # (B, G, NQ, NV)
    att_t = _pad_to(_pad_to(att_t, 2, 8), 3, 8).astype(cdt)   # (B, G, NQp, NVp)
    NVp, NQp = v_p.shape[1], q_p.shape[1]

    budget = (vmem_budget_bytes if vmem_budget_bytes is not None
              else _default_vmem_budget())
    fits = lambda t: (_footprint_bytes(t, NVp, NQp, VD, H, G, cbytes, obytes)
                      + (2 << 20)) <= budget
    TB = batch_tile if batch_tile is not None else _pick_batch_tile(B, fits)
    assert B % TB == 0, "batch must be divisible by the batch tile"
    NB = B // TB

    footprint = _footprint_bytes(TB, NVp, NQp, VD, H, G, cbytes, obytes)
    vmem_limit = int(min(max(footprint + (4 << 20), 16 << 20), budget))

    flops = 2 * B * G * (NVp * VD * H + NQp * H * H + NQp * NVp * H + H * H)
    bytes_accessed = (B * NVp * VD * cbytes + B * NQp * H * 4
                      + B * G * NQp * NVp * cbytes
                      + NB * G * (VD * H + 2 * H * H) * cbytes
                      + 3 * G * H * 4 + B * H * obytes)

    kernel = functools.partial(_biresnet_kernel, NQ)

    return pl.pallas_call(
        kernel,
        out_shape=jax.ShapeDtypeStruct((B, H), out_dtype),
        grid=(NB, G),
        in_specs=[
            pl.BlockSpec((TB, NVp, VD), lambda b, g: (b, 0, 0)),
            pl.BlockSpec((TB, NQp, H), lambda b, g: (b, 0, 0)),
            pl.BlockSpec((TB, pl.Squeezed(), NQp, NVp), lambda b, g: (b, g, 0, 0)),
            pl.BlockSpec((pl.Squeezed(), VD, H), lambda b, g: (g, 0, 0)),
            pl.BlockSpec((pl.Squeezed(), H, H), lambda b, g: (g, 0, 0)),
            pl.BlockSpec((pl.Squeezed(), H, H), lambda b, g: (g, 0, 0)),
            # Biases are tiny (G*3*H f32): keep all glimpses resident.
            pl.BlockSpec((G, 1, H), lambda b, g: (0, 0, 0)),
            pl.BlockSpec((G, 1, H), lambda b, g: (0, 0, 0)),
            pl.BlockSpec((G, 1, H), lambda b, g: (0, 0, 0)),
        ],
        out_specs=pl.BlockSpec((TB, H), lambda b, g: (b, 0)),
        scratch_shapes=[pltpu.VMEM((TB, NQp, H), jnp.float32)],
        compiler_params=pltpu.CompilerParams(
            dimension_semantics=("parallel", "arbitrary"),
            vmem_limit_bytes=vmem_limit),
        cost_estimate=pl.CostEstimate(
            flops=int(flops), transcendentals=0,
            bytes_accessed=int(bytes_accessed)),
    )(v_p, q_p, att_t,
      prepared["wv_t"], prepared["wq_t"], prepared["wp_t"],
      prepared["bv"], prepared["bq"], prepared["bp"])


# ---------------------------------------------------------------------------
# Parameter init + pure-JAX reference
# ---------------------------------------------------------------------------
def _weight_norm_effective(v, g_scale):
    # PyTorch weight_norm(dim=None): W = g * V / ||V||_F , g is a scalar.
    return g_scale * v / jnp.sqrt(jnp.sum(v * v))


def init_params(key, glimpse, v_dim, hid_dim):
    wv, bv, wq, bq, wp, bp = [], [], [], [], [], []
    for _ in range(glimpse):
        key, *ks = jax.random.split(key, 7)
        # v_net : Linear(v_dim, hid_dim)   (PyTorch (out, in) layout)
        v_raw = jax.random.normal(ks[0], (hid_dim, v_dim), jnp.float32) * 0.05
        wv.append(_weight_norm_effective(v_raw, jnp.sqrt(jnp.sum(v_raw * v_raw))))
        bv.append(jax.random.normal(ks[1], (1, hid_dim), jnp.float32) * 0.05)
        # q_net : Linear(hid_dim, hid_dim)
        q_raw = jax.random.normal(ks[2], (hid_dim, hid_dim), jnp.float32) * 0.05
        wq.append(_weight_norm_effective(q_raw, jnp.sqrt(jnp.sum(q_raw * q_raw))))
        bq.append(jax.random.normal(ks[3], (1, hid_dim), jnp.float32) * 0.05)
        # q_prj : Linear(hid_dim, hid_dim), no activation
        p_raw = jax.random.normal(ks[4], (hid_dim, hid_dim), jnp.float32) * 0.05
        wp.append(_weight_norm_effective(p_raw, jnp.sqrt(jnp.sum(p_raw * p_raw))))
        bp.append(jax.random.normal(ks[5], (1, hid_dim), jnp.float32) * 0.05)
    return {
        "wv": jnp.stack(wv), "bv": jnp.stack(bv),
        "wq": jnp.stack(wq), "bq": jnp.stack(bq),
        "wp": jnp.stack(wp), "bp": jnp.stack(bp),
    }


def reference_forward(v_emb, q_emb, att_p, params):
    """Pure-JAX reference mirroring the PyTorch forward (eval mode)."""
    G = att_p.shape[1]
    q = q_emb
    for g in range(G):
        vg = jax.nn.relu(jnp.einsum("bif,hf->bih", v_emb, params["wv"][g])
                         + params["bv"][g])
        qg = jax.nn.relu(jnp.einsum("bjf,hf->bjh", q, params["wq"][g])
                         + params["bq"][g])
        logits = jnp.einsum("bih,bij,bjh->bh", vg, att_p[:, g], qg)
        proj = jnp.einsum("bh,gh->bg", logits, params["wp"][g]) + params["bp"][g][0]
        q = q + proj[:, None, :]
    return q.sum(axis=1)


# ---------------------------------------------------------------------------
# Smoke test
# ---------------------------------------------------------------------------
if __name__ == "__main__":
    # NV / NQ deliberately not multiples of 8 to exercise the padding + mask path.
    B, NV, NQ = 2, 10, 6
    V_DIM, HID, GLIMPSE = 32, 32, 2

    key = jax.random.PRNGKey(0)
    k1, k2, k3, k4 = jax.random.split(key, 4)

    v_emb = jax.random.normal(k1, (B, NV, V_DIM), jnp.float32)
    q_emb = jax.random.normal(k2, (B, NQ, HID), jnp.float32)
    att_p = jax.nn.softmax(
        jax.random.normal(k3, (B, GLIMPSE, NV, NQ), jnp.float32), axis=-1)

    params = init_params(k4, GLIMPSE, V_DIM, HID)
    ref = reference_forward(v_emb, q_emb, att_p, params)

    # Exact f32 path.
    prep_f32 = prepare_params(params, jnp.float32)
    out_f32 = jax.block_until_ready(biresnet_forward(v_emb, q_emb, att_p, prep_f32))
    assert out_f32.shape == (B, HID)
    assert jnp.allclose(out_f32, ref, atol=1e-4, rtol=1e-4), "f32 mismatch vs reference"

    # Default bf16 MXU-operand path (f32 accumulation / f32 carry).
    prep_bf16 = prepare_params(params)                       # bf16 by default
    out_bf16 = jax.block_until_ready(biresnet_forward(v_emb, q_emb, att_p, prep_bf16))
    assert out_bf16.shape == (B, HID)
    assert jnp.allclose(out_bf16.astype(jnp.float32), ref, atol=1e-1, rtol=1e-1), \
        "bf16 mismatch vs reference"

    print("KERNEL_OK")
</pallas_src>

<mosaic_0001>
module attributes {stable_mosaic.version = 11 : i64} {
  func.func @_biresnet_kernel(%arg0: i32, %arg1: i32, %arg2: memref<2x16x32xf32, #tpu.memory_space<vmem>>, %arg3: memref<2x8x32xf32, #tpu.memory_space<vmem>>, %arg4: memref<2x1x8x16xf32, #tpu.memory_space<vmem>>, %arg5: memref<1x32x32xf32, #tpu.memory_space<vmem>>, %arg6: memref<1x32x32xf32, #tpu.memory_space<vmem>>, %arg7: memref<1x32x32xf32, #tpu.memory_space<vmem>>, %arg8: memref<2x1x32xf32, #tpu.memory_space<vmem>>, %arg9: memref<2x1x32xf32, #tpu.memory_space<vmem>>, %arg10: memref<2x1x32xf32, #tpu.memory_space<vmem>>, %arg11: memref<2x32xf32, #tpu.memory_space<vmem>>, %arg12: memref<2x8x32xf32, #tpu.memory_space<vmem>>) attributes {dimension_semantics = [#tpu.dimension_semantics<parallel>, #tpu.dimension_semantics<arbitrary>], iteration_bounds = array<i64: 1, 2>, scalar_prefetch = 0 : i64, scratch_operands = 1 : i64, tpu.core_type = #tpu.core_type<tc>, window_params = [{transform_indices = @transform_0, window_bounds = array<i64: 2, 16, 32>}, {transform_indices = @transform_1, window_bounds = array<i64: 2, 8, 32>}, {transform_indices = @transform_2, window_bounds = array<i64: 2, 1, 8, 16>}, {transform_indices = @transform_3, window_bounds = array<i64: 1, 32, 32>}, {transform_indices = @transform_4, window_bounds = array<i64: 1, 32, 32>}, {transform_indices = @transform_5, window_bounds = array<i64: 1, 32, 32>}, {pipeline_mode = #tpu.pipeline_mode<synchronous>, transform_indices = @transform_6, window_bounds = array<i64: 2, 1, 32>}, {pipeline_mode = #tpu.pipeline_mode<synchronous>, transform_indices = @transform_7, window_bounds = array<i64: 2, 1, 32>}, {pipeline_mode = #tpu.pipeline_mode<synchronous>, transform_indices = @transform_8, window_bounds = array<i64: 2, 1, 32>}, {transform_indices = @transform_9, window_bounds = array<i64: 2, 32>}]} {
    %c0_i32 = arith.constant 0 : i32
    %0 = arith.cmpi eq, %arg1, %c0_i32 : i32
    %1 = arith.extui %0 : i1 to i32
    %c0_i32_0 = arith.constant 0 : i32
    %2 = arith.cmpi ne, %1, %c0_i32_0 : i32
    scf.if %2 {
      %c0_38 = arith.constant 0 : index
      %c0_39 = arith.constant 0 : index
      %c0_40 = arith.constant 0 : index
      %50 = vector.load %arg3[%c0_38, %c0_39, %c0_40] : memref<2x8x32xf32, #tpu.memory_space<vmem>>, vector<2x8x32xf32>
      %c0_41 = arith.constant 0 : index
      %c0_42 = arith.constant 0 : index
      %c0_43 = arith.constant 0 : index
      %51 = vector.load %arg12[%c0_41, %c0_42, %c0_43] : memref<2x8x32xf32, #tpu.memory_space<vmem>>, vector<2x8x32xf32>
      tpu.vector_store %arg12[%c0_41, %c0_42, %c0_43], %50 {strides = array<i32>} : memref<2x8x32xf32, #tpu.memory_space<vmem>>, vector<2x8x32xf32>,
    } else {
    }
    %c0 = arith.constant 0 : index
    %c0_1 = arith.constant 0 : index
    %c0_2 = arith.constant 0 : index
    %3 = vector.load %arg2[%c0, %c0_1, %c0_2] : memref<2x16x32xf32, #tpu.memory_space<vmem>>, vector<2x16x32xf32>
    %4 = vector.shape_cast %3 : vector<2x16x32xf32> to vector<32x32xf32>
    %c0_3 = arith.constant 0 : index
    %c0_4 = arith.constant 0 : index
    %c0_5 = arith.constant 0 : index
    %5 = vector.load %arg5[%c0_3, %c0_4, %c0_5] : memref<1x32x32xf32, #tpu.memory_space<vmem>>, vector<1x32x32xf32>
    %6 = vector.shape_cast %5 : vector<1x32x32xf32> to vector<32x32xf32>
    %cst = arith.constant dense<0.000000e+00> : vector<32x32xf32>
    %7 = tpu.matmul %4, %6, %cst {dimension_numbers = #tpu.dot_dimension_numbers<[1], [0], [0], [1], [0, 0, 1, 1], [], []>} : vector<32x32xf32>, vector<32x32xf32>, vector<32x32xf32> -> vector<32x32xf32>
    %8 = arith.index_cast %arg1 : i32 to index
    %c0_6 = arith.constant 0 : index
    %c0_7 = arith.constant 0 : index
    %9 = vector.load %arg8[%8, %c0_6, %c0_7] : memref<2x1x32xf32, #tpu.memory_space<vmem>>, vector<1x1x32xf32>
    %10 = vector.shape_cast %9 : vector<1x1x32xf32> to vector<1x32xf32>
    %11 = vector.broadcast %10 : vector<1x32xf32> to vector<32x32xf32>
    %12 = arith.addf %7, %11 : vector<32x32xf32>
    %cst_8 = arith.constant 0.000000e+00 : f32
    %13 = vector.broadcast %cst_8 : f32 to vector<32x32xf32>
    %14 = arith.maximumf %12, %13 : vector<32x32xf32>
    %c0_9 = arith.constant 0 : index
    %c0_10 = arith.constant 0 : index
    %c0_11 = arith.constant 0 : index
    %15 = vector.load %arg12[%c0_9, %c0_10, %c0_11] : memref<2x8x32xf32, #tpu.memory_space<vmem>>, vector<2x8x32xf32>
    %16 = vector.shape_cast %15 : vector<2x8x32xf32> to vector<16x32xf32>
    %c0_12 = arith.constant 0 : index
    %c0_13 = arith.constant 0 : index
    %c0_14 = arith.constant 0 : index
    %17 = vector.load %arg6[%c0_12, %c0_13, %c0_14] : memref<1x32x32xf32, #tpu.memory_space<vmem>>, vector<1x32x32xf32>
    %18 = vector.shape_cast %17 : vector<1x32x32xf32> to vector<32x32xf32>
    %cst_15 = arith.constant dense<0.000000e+00> : vector<16x32xf32>
    %19 = tpu.matmul %16, %18, %cst_15 {dimension_numbers = #tpu.dot_dimension_numbers<[1], [0], [0], [1], [0, 0, 1, 1], [], []>} : vector<16x32xf32>, vector<32x32xf32>, vector<16x32xf32> -> vector<16x32xf32>
    %20 = arith.index_cast %arg1 : i32 to index
    %c0_16 = arith.constant 0 : index
    %c0_17 = arith.constant 0 : index
    %21 = vector.load %arg9[%20, %c0_16, %c0_17] : memref<2x1x32xf32, #tpu.memory_space<vmem>>, vector<1x1x32xf32>
    %22 = vector.shape_cast %21 : vector<1x1x32xf32> to vector<1x32xf32>
    %23 = vector.broadcast %22 : vector<1x32xf32> to vector<16x32xf32>
    %24 = arith.addf %19, %23 : vector<16x32xf32>
    %cst_18 = arith.constant 0.000000e+00 : f32
    %25 = vector.broadcast %cst_18 : f32 to vector<16x32xf32>
    %26 = arith.maximumf %24, %25 : vector<16x32xf32>
    %27 = vector.shape_cast %26 : vector<16x32xf32> to vector<2x8x32xf32>
    %c0_19 = arith.constant 0 : index
    %c0_20 = arith.constant 0 : index
    %c0_21 = arith.constant 0 : index
    %c0_22 = arith.constant 0 : index
    %28 = vector.load %arg4[%c0_19, %c0_20, %c0_21, %c0_22] : memref<2x1x8x16xf32, #tpu.memory_space<vmem>>, vector<2x1x8x16xf32>
    %29 = vector.shape_cast %28 : vector<2x1x8x16xf32> to vector<2x8x16xf32>
    %30 = vector.shape_cast %14 : vector<32x32xf32> to vector<2x16x32xf32>
    "tpu.trace_start"() <{level = 10 : i32, message = "bqi,bih->bqh"}> : () -> ()
    %cst_23 = arith.constant dense<0.000000e+00> : vector<2x8x32xf32>
    %31 = tpu.matmul %29, %30, %cst_23 {dimension_numbers = #tpu.dot_dimension_numbers<[2], [1], [1], [2], [0, 0, 0, 1, 1, 2], [0], [0]>} : vector<2x8x16xf32>, vector<2x16x32xf32>, vector<2x8x32xf32> -> vector<2x8x32xf32>
    "tpu.trace_stop"() : () -> ()
    %32 = arith.mulf %31, %27 : vector<2x8x32xf32>
    %cst_24 = arith.constant dense<0.000000e+00> : vector<2x32xf32>
    %33 = vector.multi_reduction <add>, %32, %cst_24 [1] : vector<2x8x32xf32> to vector<2x32xf32>
    %c0_25 = arith.constant 0 : index
    %c0_26 = arith.constant 0 : index
    %c0_27 = arith.constant 0 : index
    %34 = vector.load %arg7[%c0_25, %c0_26, %c0_27] : memref<1x32x32xf32, #tpu.memory_space<vmem>>, vector<1x32x32xf32>
    %35 = vector.shape_cast %34 : vector<1x32x32xf32> to vector<32x32xf32>
    %cst_28 = arith.constant dense<0.000000e+00> : vector<2x32xf32>
    %36 = tpu.matmul %33, %35, %cst_28 {dimension_numbers = #tpu.dot_dimension_numbers<[1], [0], [0], [1], [0, 0, 1, 1], [], []>} : vector<2x32xf32>, vector<32x32xf32>, vector<2x32xf32> -> vector<2x32xf32>
    %37 = arith.index_cast %arg1 : i32 to index
    %c0_29 = arith.constant 0 : index
    %c0_30 = arith.constant 0 : index
    %38 = vector.load %arg10[%37, %c0_29, %c0_30] : memref<2x1x32xf32, #tpu.memory_space<vmem>>, vector<1x1x32xf32>
    %39 = vector.shape_cast %38 : vector<1x1x32xf32> to vector<1x32xf32>
    %40 = vector.broadcast %39 : vector<1x32xf32> to vector<2x32xf32>
    %41 = arith.addf %36, %40 : vector<2x32xf32>
    %c0_31 = arith.constant 0 : index
    %c0_32 = arith.constant 0 : index
    %c0_33 = arith.constant 0 : index
    %42 = vector.load %arg12[%c0_31, %c0_32, %c0_33] : memref<2x8x32xf32, #tpu.memory_space<vmem>>, vector<2x8x32xf32>
    %43 = vector.shape_cast %41 : vector<2x32xf32> to vector<2x1x32xf32>
    %44 = vector.broadcast %43 : vector<2x1x32xf32> to vector<2x8x32xf32>
    %45 = arith.addf %42, %44 : vector<2x8x32xf32>
    %c0_34 = arith.constant 0 : index
    %c0_35 = arith.constant 0 : index
    %c0_36 = arith.constant 0 : index
    %46 = vector.load %arg12[%c0_34, %c0_35, %c0_36] : memref<2x8x32xf32, #tpu.memory_space<vmem>>, vector<2x8x32xf32>
    tpu.vector_store %arg12[%c0_34, %c0_35, %c0_36], %45 {strides = array<i32>} : memref<2x8x32xf32, #tpu.memory_space<vmem>>, vector<2x8x32xf32>,
    %c1_i32 = arith.constant 1 : i32
    %47 = arith.cmpi eq, %arg1, %c1_i32 : i32
    %48 = arith.extui %47 : i1 to i32
    %c0_i32_37 = arith.constant 0 : i32
    %49 = arith.cmpi ne, %48, %c0_i32_37 : i32
    scf.if %49 {
      %c0_38 = arith.constant 0 : index
      %c0_39 = arith.constant 0 : index
      %c0_40 = arith.constant 0 : index
      %50 = vector.load %arg12[%c0_38, %c0_39, %c0_40] : memref<2x8x32xf32, #tpu.memory_space<vmem>>, vector<2x8x32xf32>
      %51 = tpu.iota {dimensions = array<i32: 1>} : vector<1x8x1xi32>
      %c6_i32 = arith.constant 6 : i32
      %52 = vector.broadcast %c6_i32 : i32 to vector<1x8x1xi32>
      %53 = arith.cmpi slt, %51, %52 : vector<1x8x1xi32>
      %cst_41 = arith.constant 0.000000e+00 : f32
      %54 = vector.shape_cast %53 : vector<1x8x1xi1> to vector<1x8x1xi1>
      %55 = vector.broadcast %54 : vector<1x8x1xi1> to vector<2x8x32xi1>
      %56 = vector.broadcast %cst_41 : f32 to vector<2x8x32xf32>
      %57 = arith.select %55, %50, %56 : vector<2x8x32xi1>, vector<2x8x32xf32>
      %cst_42 = arith.constant dense<0.000000e+00> : vector<2x32xf32>
      %58 = vector.multi_reduction <add>, %57, %cst_42 [1] : vector<2x8x32xf32> to vector<2x32xf32>
      %c0_43 = arith.constant 0 : index
      %c0_44 = arith.constant 0 : index
      %59 = vector.load %arg11[%c0_43, %c0_44] : memref<2x32xf32, #tpu.memory_space<vmem>>, vector<2x32xf32>
      tpu.vector_store %arg11[%c0_43, %c0_44], %58 {strides = array<i32>} : memref<2x32xf32, #tpu.memory_space<vmem>>, vector<2x32xf32>,
    } else {
    }
    return
  }
  func.func @transform_0(%arg0: i32, %arg1: i32) -> (i32, i32, i32) {
    %c0_i32 = arith.constant 0 : i32
    %c0_i32_0 = arith.constant 0 : i32
    %c0_i32_1 = arith.constant 0 : i32
    return %arg0, %c0_i32, %c0_i32_0 : i32, i32, i32
  }
  func.func @transform_1(%arg0: i32, %arg1: i32) -> (i32, i32, i32) {
    %c0_i32 = arith.constant 0 : i32
    %c0_i32_0 = arith.constant 0 : i32
    %c0_i32_1 = arith.constant 0 : i32
    return %arg0, %c0_i32, %c0_i32_0 : i32, i32, i32
  }
  func.func @transform_2(%arg0: i32, %arg1: i32) -> (i32, i32, i32, i32) {
    %c0_i32 = arith.constant 0 : i32
    %c0_i32_0 = arith.constant 0 : i32
    %c0_i32_1 = arith.constant 0 : i32
    return %arg0, %arg1, %c0_i32, %c0_i32_0 : i32, i32, i32, i32
  }
  func.func @transform_3(%arg0: i32, %arg1: i32) -> (i32, i32, i32) {
    %c0_i32 = arith.constant 0 : i32
    %c0_i32_0 = arith.constant 0 : i32
    %c0_i32_1 = arith.constant 0 : i32
    return %arg1, %c0_i32, %c0_i32_0 : i32, i32, i32
  }
  func.func @transform_4(%arg0: i32, %arg1: i32) -> (i32, i32, i32) {
    %c0_i32 = arith.constant 0 : i32
    %c0_i32_0 = arith.constant 0 : i32
    %c0_i32_1 = arith.constant 0 : i32
    return %arg1, %c0_i32, %c0_i32_0 : i32, i32, i32
  }
  func.func @transform_5(%arg0: i32, %arg1: i32) -> (i32, i32, i32) {
    %c0_i32 = arith.constant 0 : i32
    %c0_i32_0 = arith.constant 0 : i32
    %c0_i32_1 = arith.constant 0 : i32
    return %arg1, %c0_i32, %c0_i32_0 : i32, i32, i32
  }
  func.func @transform_6(%arg0: i32, %arg1: i32) -> (i32, i32, i32) {
    %c0_i32 = arith.constant 0 : i32
    %c0_i32_0 = arith.constant 0 : i32
    %c0_i32_1 = arith.constant 0 : i32
    %c0_i32_2 = arith.constant 0 : i32
    return %c0_i32, %c0_i32_0, %c0_i32_1 : i32, i32, i32
  }
  func.func @transform_7(%arg0: i32, %arg1: i32) -> (i32, i32, i32) {
    %c0_i32 = arith.constant 0 : i32
    %c0_i32_0 = arith.constant 0 : i32
    %c0_i32_1 = arith.constant 0 : i32
    %c0_i32_2 = arith.constant 0 : i32
    return %c0_i32, %c0_i32_0, %c0_i32_1 : i32, i32, i32
  }
  func.func @transform_8(%arg0: i32, %arg1: i32) -> (i32, i32, i32) {
    %c0_i32 = arith.constant 0 : i32
    %c0_i32_0 = arith.constant 0 : i32
    %c0_i32_1 = arith.constant 0 : i32
    %c0_i32_2 = arith.constant 0 : i32
    return %c0_i32, %c0_i32_0, %c0_i32_1 : i32, i32, i32
  }
  func.func @transform_9(%arg0: i32, %arg1: i32) -> (i32, i32) {
    %c0_i32 = arith.constant 0 : i32
    %c0_i32_0 = arith.constant 0 : i32
    return %arg0, %c0_i32 : i32, i32
  }
}

</mosaic_0001>

<llo_original>
// kernel: tpu_custom_call.1
$region0: #{tpu_custom_call.1}
  #allocation0 [shape = 'u32[]', space=smem, size = 0x4, offset = 0x4, fixed_abs, tag = 'smem constant byte address 0x4 - core index']
  #allocation1 [shape = 'u32[144,128]{1,0:T(1,128)}', space=vmem, size = 0x12000, scoped, tag = 'internal scratch']
  #allocation2 [shape = 'f32[2,8,32]{2,1,0:T(8,128)}', space=vmem, size = 0x2000, scoped, tag = 'scratch operand']
  %s0 = inlined_call_operand.hbm [shape: f32[2,16,32], index: 0, kind: input, shape index: {}]
  %s1 = inlined_call_operand.hbm [shape: f32[2,8,32], index: 1, kind: input, shape index: {}]
  %s2 = inlined_call_operand.hbm [shape: f32[2,2,8,16], index: 2, kind: input, shape index: {}]
  %s3 = inlined_call_operand.hbm [shape: f32[2,32,32], index: 3, kind: input, shape index: {}]
  %s4 = inlined_call_operand.hbm [shape: f32[2,32,32], index: 4, kind: input, shape index: {}]
  %s5 = inlined_call_operand.hbm [shape: f32[2,32,32], index: 5, kind: input, shape index: {}]
  %s6 = inlined_call_operand.vmem [shape: f32[2,1,32], index: 6, kind: input, shape index: {}]
  %s7 = inlined_call_operand.vmem [shape: f32[2,1,32], index: 7, kind: input, shape index: {}]
  %s8 = inlined_call_operand.vmem [shape: f32[2,1,32], index: 8, kind: input, shape index: {}]
  %s9 = inlined_call_operand.hbm [shape: f32[2,32], index: 9, kind: output, shape index: {}]
  %s10 = sld [smem:[#allocation0]]
  $region101: #{tpu_custom_call.1} parent=0
    _
  %s12 = ssub.s32 1, %s10
  %s13 = scalar_select 0, %s12, %s10
  $region1: #{tpu_custom_call.1} parent=0
    #allocation3 [shape = 'u8[16384]{0}', space=vmem, size = 0x4000, scoped, tag = 'input window, operand 0, single buffered']
    #allocation4 [shape = 's32[2]{0}', space=sflag, size = 0x8, scoped, tag = 'scoped memory for tpu_custom_call.1']
    #allocation5 [shape = 's32[2]{0}', space=sflag, size = 0x8, scoped, tag = 'scoped memory for tpu_custom_call.1']
    #allocation6 [shape = 'u8[8192]{0}', space=vmem, size = 0x2000, scoped, tag = 'input window, operand 1, single buffered']
    #allocation7 [shape = 's32[1]{0}', space=sflag, size = 0x4, scoped, tag = 'scoped memory for tpu_custom_call.1']
    #allocation8 [shape = 'u8[16384]{0}', space=vmem, size = 0x4000, scoped, tag = 'input window, operand 2']
    #allocation9 [shape = 'u8[32768]{0}', space=vmem, size = 0x8000, scoped, tag = 'input window, operand 3']
    #allocation10 [shape = 'u8[32768]{0}', space=vmem, size = 0x8000, scoped, tag = 'input window, operand 4']
    #allocation11 [shape = 'u8[32768]{0}', space=vmem, size = 0x8000, scoped, tag = 'input window, operand 5']
    #allocation12 [shape = 'u8[1024]{0}', space=vmem, size = 0x400, scoped, tag = 'output window, operand 0, single buffered']
    %14 = vsyncpa [#allocation4], 0
    %15 = vsyncpa [#allocation7], 0
    %16 = vsyncpa [#allocation5], 0
    loop: start=0, step=1, limit=4
    $region2: #{tpu_custom_call.1} parent=1 // loop_pre_header
      _
    $region3: #{tpu_custom_call.1} parent=1 // loop_header
      %s18 = sphi 0, %s22
      %p19 = scmp.ge.s32.totalorder %s18, 4
      %s25 = sphi 0, %s37
      %s26 = sphi 0, %s33
      %s27 = sphi 0, %s25
      %s28 = sphi 0, %s26
      %s29 = sphi 0, %s27
      %s30 = sphi 0, %s28
      %s40 = sphi 0, %s42
      %s43 = sphi 0, %s40
      %s44 = sphi 0, %s43
      %s60 = sphi 0, %s44
      %s66 = sphi 0, %s68
      %s69 = sphi 0, %s66
      %s70 = sphi 0, %s69
      %s86 = sphi 0, %s70
      %s94 = sphi 0, %s96
      %s97 = sphi 0, %s94
      %s98 = sphi 0, %s97
      %s114 = sphi 0, %s98
      %s120 = sphi 0, %s122
      %s123 = sphi 0, %s120
      %s124 = sphi 0, %s123
      %s140 = sphi 0, %s124
      %s146 = sphi 0, %s148
      %s149 = sphi 0, %s146
      %s150 = sphi 0, %s149
      %s166 = sphi 0, %s150
      %s172 = sphi 0, %s174
      %s175 = sphi 0, %s172
      %s176 = sphi 0, %s175
      %s192 = sphi 0, %s176
      %s196 = sphi 0, %s196
      %s198 = sphi 0, %s196
      %s199 = sphi 0, %s198
      %s213 = sphi 0, %s199
      %s217 = sphi 0, %s217
      %s219 = sphi 0, %s217
      %s220 = sphi 0, %s219
      %s234 = sphi 0, %s220
      %s238 = sphi 0, %s238
      %s240 = sphi 0, %s238
      %s241 = sphi 0, %s240
      %s255 = sphi 0, %s241
      %s261 = sphi 0, %s263
      %s264 = sphi 0, %s261
      %s265 = sphi 0, %s264
      %s281 = sphi 0, %s265
    $region4: #{tpu_custom_call.1} parent=1 // loop_header_branch
      %21 = sbr.rel (%p19) target = $region8
    $region5: #{tpu_custom_call.1} parent=1 // loop_body
      %s23 = ssub.s32 %s18, 1
      %s24 = ssub.s32 %s18, 2
      %s31 = sadd.s32 1, %s26
      %p32 = scmp.ge.s32.totalorder %s31, 2
      %s33 = scalar_select %p32, 0, %s31
      %s34 = sadd.s32 1, %s25
      %s35 = scalar_select %p32, %s34, %s25
      %p36 = scmp.ge.s32.totalorder %s35, 1
      %s37 = scalar_select %p36, 0, %s35
      %s38 = ssub.s32 %s25, %s37
      %p39 = scmp.eq.s32.totalorder %s38, 0
      %s41 = sadd.s32 %s40, 1
      %s42 = scalar_select %p39, %s40, %s41
      %p45 = pneg %p39
      %p46 = scmp.eq.s32.totalorder %s18, 1
      %p47 = por %p45, %p46
      %p48 = scmp.ne.s32.totalorder %s40, %s43
      %p49 = scmp.eq.s32.totalorder %s18, 0
      %p50 = por %p48, %p49
      %p51 = scmp.ne.s32.totalorder %s40, %s43
      %p52 = scmp.eq.s32.totalorder %s23, 1
      %p53 = por %p51, %p52
      %p54 = scmp.ne.s32.totalorder %s43, %s44
      %p55 = scmp.eq.s32.totalorder %s23, 0
      %p56 = por %p54, %p55
      %p57 = scmp.ne.s32.totalorder %s43, %s44
      %p58 = scmp.eq.s32.totalorder %s24, 1
      %p59 = por %p57, %p58
      %p61 = scmp.ne.s32.totalorder %s44, %s60
      %p62 = scmp.eq.s32.totalorder %s24, 0
      %p63 = por %p61, %p62
      %s64 = ssub.s32 %s25, %s37
      %p65 = scmp.eq.s32.totalorder %s64, 0
      %s67 = sadd.s32 %s66, 1
      %s68 = scalar_select %p65, %s66, %s67
      %p71 = pneg %p65
      %p72 = scmp.eq.s32.totalorder %s18, 1
      %p73 = por %p71, %p72
      %p74 = scmp.ne.s32.totalorder %s66, %s69
      %p75 = scmp.eq.s32.totalorder %s18, 0
      %p76 = por %p74, %p75
      %p77 = scmp.ne.s32.totalorder %s66, %s69
      %p78 = scmp.eq.s32.totalorder %s23, 1
      %p79 = por %p77, %p78
      %p80 = scmp.ne.s32.totalorder %s69, %s70
      %p81 = scmp.eq.s32.totalorder %s23, 0
      %p82 = por %p80, %p81
      %p83 = scmp.ne.s32.totalorder %s69, %s70
      %p84 = scmp.eq.s32.totalorder %s24, 1
      %p85 = por %p83, %p84
      %p87 = scmp.ne.s32.totalorder %s70, %s86
      %p88 = scmp.eq.s32.totalorder %s24, 0
      %p89 = por %p87, %p88
      %s90 = ssub.s32 %s25, %s37
      %s91 = ssub.s32 %s26, %s33
      %s92 = sor.u32 %s90, %s91
      %p93 = scmp.eq.s32.totalorder %s92, 0
      %s95 = sadd.s32 %s94, 1
      %s96 = scalar_select %p93, %s94, %s95
      %p99 = pneg %p93
      %p100 = scmp.eq.s32.totalorder %s18, 1
      %p101 = por %p99, %p100
      %p102 = scmp.ne.s32.totalorder %s94, %s97
      %p103 = scmp.eq.s32.totalorder %s18, 0
      %p104 = por %p102, %p103
      %p105 = scmp.ne.s32.totalorder %s94, %s97
      %p106 = scmp.eq.s32.totalorder %s23, 1
      %p107 = por %p105, %p106
      %p108 = scmp.ne.s32.totalorder %s97, %s98
      %p109 = scmp.eq.s32.totalorder %s23, 0
      %p110 = por %p108, %p109
      %p111 = scmp.ne.s32.totalorder %s97, %s98
      %p112 = scmp.eq.s32.totalorder %s24, 1
      %p113 = por %p111, %p112
      %p115 = scmp.ne.s32.totalorder %s98, %s114
      %p116 = scmp.eq.s32.totalorder %s24, 0
      %p117 = por %p115, %p116
      %s118 = ssub.s32 %s26, %s33
      %p119 = scmp.eq.s32.totalorder %s118, 0
      %s121 = sadd.s32 %s120, 1
      %s122 = scalar_select %p119, %s120, %s121
      %p125 = pneg %p119
      %p126 = scmp.eq.s32.totalorder %s18, 1
      %p127 = por %p125, %p126
      %p128 = scmp.ne.s32.totalorder %s120, %s123
      %p129 = scmp.eq.s32.totalorder %s18, 0
      %p130 = por %p128, %p129
      %p131 = scmp.ne.s32.totalorder %s120, %s123
      %p132 = scmp.eq.s32.totalorder %s23, 1
      %p133 = por %p131, %p132
      %p134 = scmp.ne.s32.totalorder %s123, %s124
      %p135 = scmp.eq.s32.totalorder %s23, 0
      %p136 = por %p134, %p135
      %p137 = scmp.ne.s32.totalorder %s123, %s124
      %p138 = scmp.eq.s32.totalorder %s24, 1
      %p139 = por %p137, %p138
      %p141 = scmp.ne.s32.totalorder %s124, %s140
      %p142 = scmp.eq.s32.totalorder %s24, 0
      %p143 = por %p141, %p142
      %s144 = ssub.s32 %s26, %s33
      %p145 = scmp.eq.s32.totalorder %s144, 0
      %s147 = sadd.s32 %s146, 1
      %s148 = scalar_select %p145, %s146, %s147
      %p151 = pneg %p145
      %p152 = scmp.eq.s32.totalorder %s18, 1
      %p153 = por %p151, %p152
      %p154 = scmp.ne.s32.totalorder %s146, %s149
      %p155 = scmp.eq.s32.totalorder %s18, 0
      %p156 = por %p154, %p155
      %p157 = scmp.ne.s32.totalorder %s146, %s149
      %p158 = scmp.eq.s32.totalorder %s23, 1
      %p159 = por %p157, %p158
      %p160 = scmp.ne.s32.totalorder %s149, %s150
      %p161 = scmp.eq.s32.totalorder %s23, 0
      %p162 = por %p160, %p161
      %p163 = scmp.ne.s32.totalorder %s149, %s150
      %p164 = scmp.eq.s32.totalorder %s24, 1
      %p165 = por %p163, %p164
      %p167 = scmp.ne.s32.totalorder %s150, %s166
      %p168 = scmp.eq.s32.totalorder %s24, 0
      %p169 = por %p167, %p168
      %s170 = ssub.s32 %s26, %s33
      %p171 = scmp.eq.s32.totalorder %s170, 0
      %s173 = sadd.s32 %s172, 1
      %s174 = scalar_select %p171, %s172, %s173
      %p177 = pneg %p171
      %p178 = scmp.eq.s32.totalorder %s18, 1
      %p179 = por %p177, %p178
      %p180 = scmp.ne.s32.totalorder %s172, %s175
      %p181 = scmp.eq.s32.totalorder %s18, 0
      %p182 = por %p180, %p181
      %p183 = scmp.ne.s32.totalorder %s172, %s175
      %p184 = scmp.eq.s32.totalorder %s23, 1
      %p185 = por %p183, %p184
      %p186 = scmp.ne.s32.totalorder %s175, %s176
      %p187 = scmp.eq.s32.totalorder %s23, 0
      %p188 = por %p186, %p187
      %p189 = scmp.ne.s32.totalorder %s175, %s176
      %p190 = scmp.eq.s32.totalorder %s24, 1
      %p191 = por %p189, %p190
      %p193 = scmp.ne.s32.totalorder %s176, %s192
      %p194 = scmp.eq.s32.totalorder %s24, 0
      %p195 = por %p193, %p194
      %s197 = sadd.s32 %s196, 1
      %p200 = scmp.eq.s32.totalorder %s18, 1
      %p201 = scmp.ne.s32.totalorder %s196, %s198
      %p202 = scmp.eq.s32.totalorder %s18, 0
      %p203 = por %p201, %p202
      %p204 = scmp.ne.s32.totalorder %s196, %s198
      %p205 = scmp.eq.s32.totalorder %s23, 1
      %p206 = por %p204, %p205
      %p207 = scmp.ne.s32.totalorder %s198, %s199
      %p208 = scmp.eq.s32.totalorder %s23, 0
      %p209 = por %p207, %p208
      %p210 = scmp.ne.s32.totalorder %s198, %s199
      %p211 = scmp.eq.s32.totalorder %s24, 1
      %p212 = por %p210, %p211
      %p214 = scmp.ne.s32.totalorder %s199, %s213
      %p215 = scmp.eq.s32.totalorder %s24, 0
      %p216 = por %p214, %p215
      %s218 = sadd.s32 %s217, 1
      %p221 = scmp.eq.s32.totalorder %s18, 1
      %p222 = scmp.ne.s32.totalorder %s217, %s219
      %p223 = scmp.eq.s32.totalorder %s18, 0
      %p224 = por %p222, %p223
      %p225 = scmp.ne.s32.totalorder %s217, %s219
      %p226 = scmp.eq.s32.totalorder %s23, 1
      %p227 = por %p225, %p226
      %p228 = scmp.ne.s32.totalorder %s219, %s220
      %p229 = scmp.eq.s32.totalorder %s23, 0
      %p230 = por %p228, %p229
      %p231 = scmp.ne.s32.totalorder %s219, %s220
      %p232 = scmp.eq.s32.totalorder %s24, 1
      %p233 = por %p231, %p232
      %p235 = scmp.ne.s32.totalorder %s220, %s234
      %p236 = scmp.eq.s32.totalorder %s24, 0
      %p237 = por %p235, %p236
      %s239 = sadd.s32 %s238, 1
      %p242 = scmp.eq.s32.totalorder %s18, 1
      %p243 = scmp.ne.s32.totalorder %s238, %s240
      %p244 = scmp.eq.s32.totalorder %s18, 0
      %p245 = por %p243, %p244
      %p246 = scmp.ne.s32.totalorder %s238, %s240
      %p247 = scmp.eq.s32.totalorder %s23, 1
      %p248 = por %p246, %p247
      %p249 = scmp.ne.s32.totalorder %s240, %s241
      %p250 = scmp.eq.s32.totalorder %s23, 0
      %p251 = por %p249, %p250
      %p252 = scmp.ne.s32.totalorder %s240, %s241
      %p253 = scmp.eq.s32.totalorder %s24, 1
      %p254 = por %p252, %p253
      %p256 = scmp.ne.s32.totalorder %s241, %s255
      %p257 = scmp.eq.s32.totalorder %s24, 0
      %p258 = por %p256, %p257
      %s259 = ssub.s32 %s25, %s37
      %p260 = scmp.eq.s32.totalorder %s259, 0
      %s262 = sadd.s32 %s261, 1
      %s263 = scalar_select %p260, %s261, %s262
      %p266 = pneg %p260
      %p267 = scmp.eq.s32.totalorder %s18, 1
      %p268 = por %p266, %p267
      %p269 = scmp.ne.s32.totalorder %s261, %s264
      %p270 = scmp.eq.s32.totalorder %s18, 0
      %p271 = por %p269, %p270
      %p272 = scmp.ne.s32.totalorder %s261, %s264
      %p273 = scmp.eq.s32.totalorder %s23, 1
      %p274 = por %p272, %p273
      %p275 = scmp.ne.s32.totalorder %s264, %s265
      %p276 = scmp.eq.s32.totalorder %s23, 0
      %p277 = por %p275, %p276
      %p278 = scmp.ne.s32.totalorder %s264, %s265
      %p279 = scmp.eq.s32.totalorder %s24, 1
      %p280 = por %p278, %p279
      %p282 = scmp.ne.s32.totalorder %s265, %s281
      %p283 = scmp.eq.s32.totalorder %s24, 0
      %p284 = por %p282, %p283
      %p285 = scmp.le.s32.totalorder 1, %s18
      %p286 = scmp.lt.s32.totalorder %s18, 3
      %p287 = pnand %p285, %p286
      %p288 = pneg %p287
      // Predicated region
      $region9: #{tpu_custom_call.1} parent=5 // pred_check
        _
      $region10: #{tpu_custom_call.1} parent=5 // pred_check_branch
        %290 = sbr.rel (%p287) target = $region12
      $region11: #{tpu_custom_call.1} parent=5 // pred_region
        %s291 = ssub.s32 %s18, 1
        // Predicated region
        $region13: #{tpu_custom_call.1} parent=11 // pred_check
          %p292 = pneg %p56
        $region14: #{tpu_custom_call.1} parent=11 // pred_check_branch
          %294 = sbr.rel (%p292) target = $region16
        $region15: #{tpu_custom_call.1} parent=11 // pred_region
          %s295 = smul.u32 2, %s27
          %s297 = ssub.s32 512, 512
          %298 = vsyncadd [#allocation4], %s297
          %s299 = smul.addr %s295, 2
          %s300 = smul.addr %s299, 128
          %s301 = scalar_lea.hbm %s0, %s300
          %s302 = sshll.u32 [#allocation3], 4
          %s303 = int_to_ptr.vmem [resolvable:$true] %s302
          %308 = dma.hbm_to_vmem [thread:$0]  %s301, 512, %s303, [#allocation4], 128, 128, 8
        $region16: #{tpu_custom_call.1} parent=11 // pred_fallthru
          _
        // Predicated region
        $region17: #{tpu_custom_call.1} parent=11 // pred_check
          %p309 = pneg %p82
        $region18: #{tpu_custom_call.1} parent=11 // pred_check_branch
          %311 = sbr.rel (%p309) target = $region20
        $region19: #{tpu_custom_call.1} parent=11 // pred_region
          %s312 = smul.u32 2, %s27
          %s314 = ssub.s32 256, 256
          %315 = vsyncadd [#allocation7], %s314
          %s316 = smul.addr %s312, 128
          %s317 = scalar_lea.hbm %s1, %s316
          %s318 = sshll.u32 [#allocation6], 4
          %s319 = int_to_ptr.vmem [resolvable:$true] %s318
          %324 = dma.hbm_to_vmem [thread:$0]  %s317, 256, %s319, [#allocation7], 128, 128, 8
        $region20: #{tpu_custom_call.1} parent=11 // pred_fallthru
          _
        // Predicated region
        $region21: #{tpu_custom_call.1} parent=11 // pred_check
          %p325 = pneg %p209
        $region22: #{tpu_custom_call.1} parent=11 // pred_check_branch
          %327 = sbr.rel (%p325) target = $region24
        $region23: #{tpu_custom_call.1} parent=11 // pred_region
          _
        $region24: #{tpu_custom_call.1} parent=11 // pred_fallthru
          _
        // Predicated region
        $region25: #{tpu_custom_call.1} parent=11 // pred_check
          %p328 = pneg %p230
        $region26: #{tpu_custom_call.1} parent=11 // pred_check_branch
          %330 = sbr.rel (%p328) target = $region28
        $region27: #{tpu_custom_call.1} parent=11 // pred_region
          _
        $region28: #{tpu_custom_call.1} parent=11 // pred_fallthru
          _
        // Predicated region
        $region29: #{tpu_custom_call.1} parent=11 // pred_check
          %p331 = pneg %p251
        $region30: #{tpu_custom_call.1} parent=11 // pred_check_branch
          %333 = sbr.rel (%p331) target = $region32
        $region31: #{tpu_custom_call.1} parent=11 // pred_region
          _
        $region32: #{tpu_custom_call.1} parent=11 // pred_fallthru
          _
      $region12: #{tpu_custom_call.1} parent=5 // pred_fallthru
        _
      %p334 = scmp.lt.s32.totalorder %s18, 2
      // Predicated region
      $region33: #{tpu_custom_call.1} parent=5 // pred_check
        %p335 = pneg %p334
      $region34: #{tpu_custom_call.1} parent=5 // pred_check_branch
        %337 = sbr.rel (%p335) target = $region36
      $region35: #{tpu_custom_call.1} parent=5 // pred_region
        // Predicated region
        $region37: #{tpu_custom_call.1} parent=35 // pred_check
          %p338 = pneg %p104
        $region38: #{tpu_custom_call.1} parent=35 // pred_check_branch
          %340 = sbr.rel (%p338) target = $region40
        $region39: #{tpu_custom_call.1} parent=35 // pred_region
          %s341 = sand.u32 %s18, 1
          %s342 = scalar_lea.sflag [#allocation4], %s341
          %s343 = sand.u32 %s94, 1
          %s344 = smul.addr %s343, 16
          %s345 = scalar_lea.vmem [#allocation8], %s344
          %s346 = smul.u32 2, %s25
          %s348 = ssub.s32 256, 256
          %349 = vsyncadd %s342, %s348
          %s350 = smul.addr %s346, 2
          %s351 = sadd.s32 %s26, %s350
          %s352 = smul.addr %s351, 128
          %s353 = scalar_lea.hbm %s2, %s352
          %s354 = sshll.u32 %s345, 4
          %s355 = int_to_ptr.vmem [resolvable:$true] %s354
          %360 = dma.hbm_to_vmem [thread:$0]  %s353, 256, %s355, %s342, 256, 128, 8
        $region40: #{tpu_custom_call.1} parent=35 // pred_fallthru
          _
        // Predicated region
        $region41: #{tpu_custom_call.1} parent=35 // pred_check
          %p361 = pneg %p130
        $region42: #{tpu_custom_call.1} parent=35 // pred_check_branch
          %363 = sbr.rel (%p361) target = $region44
        $region43: #{tpu_custom_call.1} parent=35 // pred_region
          %s364 = sand.u32 %s18, 1
          %s365 = scalar_lea.sflag [#allocation4], %s364
          %s366 = sand.u32 %s120, 1
          %s367 = smul.addr %s366, 32
          %s368 = scalar_lea.vmem [#allocation9], %s367
          %s370 = ssub.s32 512, 512
          %371 = vsyncadd %s365, %s370
          %s372 = smul.addr %s26, 4
          %s373 = smul.addr %s372, 128
          %s374 = scalar_lea.hbm %s3, %s373
          %s375 = sshll.u32 %s368, 4
          %s376 = int_to_ptr.vmem [resolvable:$true] %s375
          %381 = dma.hbm_to_vmem [thread:$0]  %s374, 512, %s376, %s365, 128, 128, 8
        $region44: #{tpu_custom_call.1} parent=35 // pred_fallthru
          _
        // Predicated region
        $region45: #{tpu_custom_call.1} parent=35 // pred_check
          %p382 = pneg %p156
        $region46: #{tpu_custom_call.1} parent=35 // pred_check_branch
          %384 = sbr.rel (%p382) target = $region48
        $region47: #{tpu_custom_call.1} parent=35 // pred_region
          %s385 = sand.u32 %s18, 1
          %s386 = scalar_lea.sflag [#allocation4], %s385
          %s387 = sand.u32 %s146, 1
          %s388 = smul.addr %s387, 32
          %s389 = scalar_lea.vmem [#allocation10], %s388
          %s391 = ssub.s32 512, 512
          %392 = vsyncadd %s386, %s391
          %s393 = smul.addr %s26, 4
          %s394 = smul.addr %s393, 128
          %s395 = scalar_lea.hbm %s4, %s394
          %s396 = sshll.u32 %s389, 4
          %s397 = int_to_ptr.vmem [resolvable:$true] %s396
          %402 = dma.hbm_to_vmem [thread:$0]  %s395, 512, %s397, %s386, 128, 128, 8
        $region48: #{tpu_custom_call.1} parent=35 // pred_fallthru
          _
        // Predicated region
        $region49: #{tpu_custom_call.1} parent=35 // pred_check
          %p403 = pneg %p182
        $region50: #{tpu_custom_call.1} parent=35 // pred_check_branch
          %405 = sbr.rel (%p403) target = $region52
        $region51: #{tpu_custom_call.1} parent=35 // pred_region
          %s406 = sand.u32 %s18, 1
          %s407 = scalar_lea.sflag [#allocation4], %s406
          %s408 = sand.u32 %s172, 1
          %s409 = smul.addr %s408, 32
          %s410 = scalar_lea.vmem [#allocation11], %s409
          %s412 = ssub.s32 512, 512
          %413 = vsyncadd %s407, %s412
          %s414 = smul.addr %s26, 4
          %s415 = smul.addr %s414, 128
          %s416 = scalar_lea.hbm %s5, %s415
          %s417 = sshll.u32 %s410, 4
          %s418 = int_to_ptr.vmem [resolvable:$true] %s417
          %423 = dma.hbm_to_vmem [thread:$0]  %s416, 512, %s418, %s407, 128, 128, 8
        $region52: #{tpu_custom_call.1} parent=35 // pred_fallthru
          _
      $region36: #{tpu_custom_call.1} parent=5 // pred_fallthru
        _
      %p424 = scmp.le.s32.totalorder 1, %s18
      %p425 = scmp.lt.s32.totalorder %s18, 3
      %p426 = pnand %p424, %p425
      %p427 = pneg %p426
      // Predicated region
      $region53: #{tpu_custom_call.1} parent=5 // pred_check
        _
      $region54: #{tpu_custom_call.1} parent=5 // pred_check_branch
        %429 = sbr.rel (%p426) target = $region56
      $region55: #{tpu_custom_call.1} parent=5 // pred_region
        %s430 = ssub.s32 %s18, 1
        // Predicated region
        $region57: #{tpu_custom_call.1} parent=55 // pred_check
          %p431 = pneg %p56
        $region58: #{tpu_custom_call.1} parent=55 // pred_check_branch
          %433 = sbr.rel (%p431) target = $region60
        $region59: #{tpu_custom_call.1} parent=55 // pred_region
          %434 = dma.done [#allocation4], 512
        $region60: #{tpu_custom_call.1} parent=55 // pred_fallthru
          _
        // Predicated region
        $region61: #{tpu_custom_call.1} parent=55 // pred_check
          %p435 = pneg %p82
        $region62: #{tpu_custom_call.1} parent=55 // pred_check_branch
          %437 = sbr.rel (%p435) target = $region64
        $region63: #{tpu_custom_call.1} parent=55 // pred_region
          %438 = dma.done [#allocation7], 256
        $region64: #{tpu_custom_call.1} parent=55 // pred_fallthru
          _
        %s439 = sand.u32 %s23, 1
        %s440 = scalar_lea.sflag [#allocation4], %s439
        %s441 = sand.u32 %s97, 1
        %s442 = smul.addr %s441, 16
        %s443 = scalar_lea.vmem [#allocation8], %s442
        // Predicated region
        $region65: #{tpu_custom_call.1} parent=55 // pred_check
          %p444 = pneg %p110
        $region66: #{tpu_custom_call.1} parent=55 // pred_check_branch
          %446 = sbr.rel (%p444) target = $region68
        $region67: #{tpu_custom_call.1} parent=55 // pred_region
          %447 = dma.done %s440, 256
        $region68: #{tpu_custom_call.1} parent=55 // pred_fallthru
          _
        %s448 = sand.u32 %s23, 1
        %s449 = scalar_lea.sflag [#allocation4], %s448
        %s450 = sand.u32 %s123, 1
        %s451 = smul.addr %s450, 32
        %s452 = scalar_lea.vmem [#allocation9], %s451
        // Predicated region
        $region69: #{tpu_custom_call.1} parent=55 // pred_check
          %p453 = pneg %p136
        $region70: #{tpu_custom_call.1} parent=55 // pred_check_branch
          %455 = sbr.rel (%p453) target = $region72
        $region71: #{tpu_custom_call.1} parent=55 // pred_region
          %456 = dma.done %s449, 512
        $region72: #{tpu_custom_call.1} parent=55 // pred_fallthru
          _
        %s457 = sand.u32 %s23, 1
        %s458 = scalar_lea.sflag [#allocation4], %s457
        %s459 = sand.u32 %s149, 1
        %s460 = smul.addr %s459, 32
        %s461 = scalar_lea.vmem [#allocation10], %s460
        // Predicated region
        $region73: #{tpu_custom_call.1} parent=55 // pred_check
          %p462 = pneg %p162
        $region74: #{tpu_custom_call.1} parent=55 // pred_check_branch
          %464 = sbr.rel (%p462) target = $region76
        $region75: #{tpu_custom_call.1} parent=55 // pred_region
          %465 = dma.done %s458, 512
        $region76: #{tpu_custom_call.1} parent=55 // pred_fallthru
          _
        %s466 = sand.u32 %s23, 1
        %s467 = scalar_lea.sflag [#allocation4], %s466
        %s468 = sand.u32 %s175, 1
        %s469 = smul.addr %s468, 32
        %s470 = scalar_lea.vmem [#allocation11], %s469
        // Predicated region
        $region77: #{tpu_custom_call.1} parent=55 // pred_check
          %p471 = pneg %p188
        $region78: #{tpu_custom_call.1} parent=55 // pred_check_branch
          %473 = sbr.rel (%p471) target = $region80
        $region79: #{tpu_custom_call.1} parent=55 // pred_region
          %474 = dma.done %s467, 512
        $region80: #{tpu_custom_call.1} parent=55 // pred_fallthru
          _
        %p475 = pneg %p56
        %p476 = pneg %p53
        %p477 = pneg %p82
        %p478 = pneg %p79
        %s479 = sand.u32 %s23, 1
        %s480 = scalar_lea.sflag [#allocation4], %s479
        %s481 = sand.u32 %s97, 1
        %s482 = smul.addr %s481, 16
        %s483 = scalar_lea.vmem [#allocation8], %s482
        %p484 = pneg %p110
        %p485 = pneg %p107
        %s486 = sand.u32 %s23, 1
        %s487 = scalar_lea.sflag [#allocation4], %s486
        %s488 = sand.u32 %s123, 1
        %s489 = smul.addr %s488, 32
        %s490 = scalar_lea.vmem [#allocation9], %s489
        %p491 = pneg %p136
        %p492 = pneg %p133
        %s493 = sand.u32 %s23, 1
        %s494 = scalar_lea.sflag [#allocation4], %s493
        %s495 = sand.u32 %s149, 1
        %s496 = smul.addr %s495, 32
        %s497 = scalar_lea.vmem [#allocation10], %s496
        %p498 = pneg %p162
        %p499 = pneg %p159
        %s500 = sand.u32 %s23, 1
        %s501 = scalar_lea.sflag [#allocation4], %s500
        %s502 = sand.u32 %s175, 1
        %s503 = smul.addr %s502, 32
        %s504 = scalar_lea.vmem [#allocation11], %s503
        %p505 = pneg %p188
        %p506 = pneg %p185
        %p507 = pneg %p209
        %p508 = pneg %p206
        %p509 = pneg %p230
        %p510 = pneg %p227
        %p511 = pneg %p251
        %p512 = pneg %p248
        %p513 = pneg %p277
        %p514 = pneg %p274
        %s515 = smul.u32 2, %s27
        %s516 = smul.u32 2, %s27
        %s517 = smul.u32 2, %s27
        %p518 = scmp.eq.s32.totalorder %s28, 0
        // Predicated region
        $region81: #{tpu_custom_call.1} parent=55 // pred_check
          %p519 = pneg %p518
        $region82: #{tpu_custom_call.1} parent=55 // pred_check_branch
          %521 = sbr.rel (%p519) target = $region84
        $region83: #{tpu_custom_call.1} parent=55 // pred_region
          %v522 = vld [vmem:[#allocation6] sm:$0xff]
          %v523 = vld [vmem:[#allocation6 + $0x8] sm:$0xff]
          %vm524 = vcmask 261120
          %525 = vst.msk [vmem:[#allocation2] sm:$0xff] %vm524, %v522
          %526 = vst.msk [vmem:[#allocation2 + $0x8] sm:$0xff] %vm524, %v523
        $region84: #{tpu_custom_call.1} parent=55 // pred_fallthru
          _
        %v527 = vld [vmem:[#allocation3] sm:$0xff]
        %v528 = vld [vmem:[#allocation3 + $0x8] sm:$0xff]
        %v529 = vld [vmem:[#allocation3 + $0x10] sm:$0xff]
        %v530 = vld [vmem:[#allocation3 + $0x18] sm:$0xff]
        %v531 = vld [vmem:[%s452] sm:$0xff]
        %v532 = vld [vmem:[%s452 + $0x8] sm:$0xff]
        %v533 = vld [vmem:[%s452 + $0x10] sm:$0xff]
        %v534 = vld [vmem:[%s452 + $0x18] sm:$0xff]
        %s535 = scalar_lea.vmem %s6, %s28
        %v536 = vld [vmem:[%s535] sm:$0x1]
        %v538 = vlaneseq
        %v539 = vshrl.u32 %v538, 7
        %v540 = vsub.s32 0, %v539
        %v541 = vrot.slane %v536, %v540
        %vm543 = vcmask 261120
        %v545 = vsel %vm543, %v527, 0
        %v548 = vsel %vm543, %v528, 0
        %v551 = vsel %vm543, %v529, 0
        %v554 = vsel %vm543, %v530, 0
        %556 = vmatprep.subr.mxu0 0.0
        %557 = vmatpush1.msra.mxu0 0.0
        %558 = vmatprep.subr.mxu0 0.0
        %559 = vmatpush1.msra.mxu0 0.0
        %560 = vmatprep.subr.mxu0 0.0
        %561 = vmatpush1.msra.mxu0 0.0
        %562 = vmatprep.subr.mxu0 0.0
        %563 = vmatpush1.msra.mxu0 0.0
        %564 = vmatprep.subr.mxu0 0.0
        %565 = vmatpush1.msra.mxu0 0.0
        %566 = vmatprep.subr.mxu0 0.0
        %567 = vmatpush1.msra.mxu0 0.0
        %568 = vmatprep.subr.mxu0 0.0
        %569 = vmatpush1.msra.mxu0 0.0
        %570 = vmatprep.subr.mxu0 0.0
        %571 = vmatpush1.msra.mxu0 0.0
        %572 = vmatprep.subr.mxu0 0.0
        %573 = vmatpush1.msra.mxu0 0.0
        %574 = vmatprep.subr.mxu0 0.0
        %575 = vmatpush1.msra.mxu0 0.0
        %576 = vmatprep.subr.mxu0 0.0
        %577 = vmatpush1.msra.mxu0 0.0
        %578 = vmatprep.subr.mxu0 0.0
        %579 = vmatpush1.msra.mxu0 0.0
        %580 = vmatprep.subr.mxu0 0.0
        %581 = vmatpush1.msra.mxu0 %v534
        %582 = vmatprep.subr.mxu0 0.0
        %583 = vmatpush1.msra.mxu0 %v533
        %584 = vmatprep.subr.mxu0 0.0
        %585 = vmatpush1.msra.mxu0 %v532
        %586 = vmatprep.subr.mxu0 0.0
        %587 = vmatpush1.msra.mxu0 %v531
        %588 = vmatprep.subr.mxu0 0.0
        %589 = vmatpush2.msra.mxu0 0.0
        %590 = vmatprep.subr.mxu0 0.0
        %591 = vmatpush2.msra.mxu0 0.0
        %592 = vmatprep.subr.mxu0 0.0
        %593 = vmatpush2.msra.mxu0 0.0
        %594 = vmatprep.subr.mxu0 0.0
        %595 = vmatpush2.msra.mxu0 0.0
        %596 = vmatprep.subr.mxu0 0.0
        %597 = vmatpush2.msra.mxu0 0.0
        %598 = vmatprep.subr.mxu0 0.0
        %599 = vmatpush2.msra.mxu0 0.0
        %600 = vmatprep.subr.mxu0 0.0
        %601 = vmatpush2.msra.mxu0 0.0
        %602 = vmatprep.subr.mxu0 0.0
        %603 = vmatpush2.msra.mxu0 0.0
        %604 = vmatprep.subr.mxu0 0.0
        %605 = vmatpush2.msra.mxu0 0.0
        %606 = vmatprep.subr.mxu0 0.0
        %607 = vmatpush2.msra.mxu0 0.0
        %608 = vmatprep.subr.mxu0 0.0
        %609 = vmatpush2.msra.mxu0 0.0
        %610 = vmatprep.subr.mxu0 0.0
        %611 = vmatpush2.msra.mxu0 0.0
        %612 = vmatprep.subr.mxu0 0.0
        %613 = vmatpush2.msra.mxu0 0.0
        %614 = vmatprep.subr.mxu0 0.0
        %615 = vmatpush2.msra.mxu0 0.0
        %616 = vmatprep.subr.mxu0 0.0
        %617 = vmatpush2.msra.mxu0 0.0
        %618 = vmatprep.subr.mxu0 0.0
        %619 = vmatpush2.msra.mxu0 0.0
        %620 = vmatprep.mubr.f32.mxu0 0.0
        %621 = vmatmul.mubr.f32.gmra.mxu0 %v545
        %v622 = vpop.f32.mrf.mxu0
        %v623 = vadd.f32 %v541, %v622
        %v624 = vpop.f32.mrf.mxu0
        %625 = vmatprep.mubr.f32.mxu0 0.0
        %626 = vmatmul.mubr.f32.gmra.mxu0 %v548
        %v627 = vpop.f32.mrf.mxu0
        %v628 = vadd.f32 %v541, %v627
        %v629 = vpop.f32.mrf.mxu0
        %630 = vmatprep.mubr.f32.mxu0 0.0
        %631 = vmatmul.mubr.f32.gmra.mxu0 %v551
        %v632 = vpop.f32.mrf.mxu0
        %v633 = vadd.f32 %v541, %v632
        %v634 = vpop.f32.mrf.mxu0
        %635 = vmatprep.mubr.f32.mxu0 0.0
        %636 = vmatmul.mubr.f32.gmra.mxu0 %v554
        %v637 = vpop.f32.mrf.mxu0
        %v638 = vadd.f32 %v541, %v637
        %v639 = vpop.f32.mrf.mxu0
        %640 = vdwg.mxu0
        %v641 = vmax.f32 %v623, 0.0
        %v642 = vmax.f32 %v628, 0.0
        %v643 = vmax.f32 %v633, 0.0
        %v644 = vmax.f32 %v638, 0.0
        %v645 = vld [vmem:[#allocation2] sm:$0xff]
        %v646 = vld [vmem:[#allocation2 + $0x8] sm:$0xff]
        %v647 = vld [vmem:[%s461] sm:$0xff]
        %v648 = vld [vmem:[%s461 + $0x8] sm:$0xff]
        %v649 = vld [vmem:[%s461 + $0x10] sm:$0xff]
        %v650 = vld [vmem:[%s461 + $0x18] sm:$0xff]
        %s651 = scalar_lea.vmem %s7, %s28
        %v652 = vld [vmem:[%s651] sm:$0x1]
        %v654 = vlaneseq
        %v655 = vshrl.u32 %v654, 7
        %v656 = vsub.s32 0, %v655
        %v657 = vrot.slane %v652, %v656
        %v660 = vsel %vm543, %v645, 0
        %v663 = vsel %vm543, %v646, 0
        %665 = vmatprep.subr.mxu0 0.0
        %666 = vmatpush1.msra.mxu0 0.0
        %667 = vmatprep.subr.mxu0 0.0
        %668 = vmatpush1.msra.mxu0 0.0
        %669 = vmatprep.subr.mxu0 0.0
        %670 = vmatpush1.msra.mxu0 0.0
        %671 = vmatprep.subr.mxu0 0.0
        %672 = vmatpush1.msra.mxu0 0.0
        %673 = vmatprep.subr.mxu0 0.0
        %674 = vmatpush1.msra.mxu0 0.0
        %675 = vmatprep.subr.mxu0 0.0
        %676 = vmatpush1.msra.mxu0 0.0
        %677 = vmatprep.subr.mxu0 0.0
        %678 = vmatpush1.msra.mxu0 0.0
        %679 = vmatprep.subr.mxu0 0.0
        %680 = vmatpush1.msra.mxu0 0.0
        %681 = vmatprep.subr.mxu0 0.0
        %682 = vmatpush1.msra.mxu0 0.0
        %683 = vmatprep.subr.mxu0 0.0
        %684 = vmatpush1.msra.mxu0 0.0
        %685 = vmatprep.subr.mxu0 0.0
        %686 = vmatpush1.msra.mxu0 0.0
        %687 = vmatprep.subr.mxu0 0.0
        %688 = vmatpush1.msra.mxu0 0.0
        %689 = vmatprep.subr.mxu0 0.0
        %690 = vmatpush1.msra.mxu0 %v650
        %691 = vmatprep.subr.mxu0 0.0
        %692 = vmatpush1.msra.mxu0 %v649
        %693 = vmatprep.subr.mxu0 0.0
        %694 = vmatpush1.msra.mxu0 %v648
        %695 = vmatprep.subr.mxu0 0.0
        %696 = vmatpush1.msra.mxu0 %v647
        %697 = vmatprep.subr.mxu0 0.0
        %698 = vmatpush2.msra.mxu0 0.0
        %699 = vmatprep.subr.mxu0 0.0
        %700 = vmatpush2.msra.mxu0 0.0
        %701 = vmatprep.subr.mxu0 0.0
        %702 = vmatpush2.msra.mxu0 0.0
        %703 = vmatprep.subr.mxu0 0.0
        %704 = vmatpush2.msra.mxu0 0.0
        %705 = vmatprep.subr.mxu0 0.0
        %706 = vmatpush2.msra.mxu0 0.0
        %707 = vmatprep.subr.mxu0 0.0
        %708 = vmatpush2.msra.mxu0 0.0
        %709 = vmatprep.subr.mxu0 0.0
        %710 = vmatpush2.msra.mxu0 0.0
        %711 = vmatprep.subr.mxu0 0.0
        %712 = vmatpush2.msra.mxu0 0.0
        %713 = vmatprep.subr.mxu0 0.0
        %714 = vmatpush2.msra.mxu0 0.0
        %715 = vmatprep.subr.mxu0 0.0
        %716 = vmatpush2.msra.mxu0 0.0
        %717 = vmatprep.subr.mxu0 0.0
        %718 = vmatpush2.msra.mxu0 0.0
        %719 = vmatprep.subr.mxu0 0.0
        %720 = vmatpush2.msra.mxu0 0.0
        %721 = vmatprep.subr.mxu0 0.0
        %722 = vmatpush2.msra.mxu0 0.0
        %723 = vmatprep.subr.mxu0 0.0
        %724 = vmatpush2.msra.mxu0 0.0
        %725 = vmatprep.subr.mxu0 0.0
        %726 = vmatpush2.msra.mxu0 0.0
        %727 = vmatprep.subr.mxu0 0.0
        %728 = vmatpush2.msra.mxu0 0.0
        %729 = vmatprep.mubr.f32.mxu0 0.0
        %730 = vmatmul.mubr.f32.gmra.mxu0 %v660
        %v731 = vpop.f32.mrf.mxu0
        %v732 = vadd.f32 %v657, %v731
        %v733 = vpop.f32.mrf.mxu0
        %734 = vmatprep.mubr.f32.mxu0 0.0
        %735 = vmatmul.mubr.f32.gmra.mxu0 %v663
        %v736 = vpop.f32.mrf.mxu0
        %v737 = vadd.f32 %v657, %v736
        %v738 = vpop.f32.mrf.mxu0
        %739 = vdwg.mxu0
        %v740 = vmax.f32 %v732, 0.0
        %v741 = vmax.f32 %v737, 0.0
        %v742 = vld [vmem:[%s443] sm:$0xff]
        %v743 = vld [vmem:[%s443 + $0x8] sm:$0xff]
        %vm744 = vcmask 130048
        %v746 = vsel %vm744, %v742, 0
        %748 = vmatprep.subr.mxu0 0.0
        %749 = vmatpush1.msra.mxu0 0.0
        %750 = vmatprep.subr.mxu0 0.0
        %751 = vmatpush1.msra.mxu0 0.0
        %752 = vmatprep.subr.mxu0 0.0
        %753 = vmatpush1.msra.mxu0 0.0
        %754 = vmatprep.subr.mxu0 0.0
        %755 = vmatpush1.msra.mxu0 0.0
        %756 = vmatprep.subr.mxu0 0.0
        %757 = vmatpush1.msra.mxu0 0.0
        %758 = vmatprep.subr.mxu0 0.0
        %759 = vmatpush1.msra.mxu0 0.0
        %760 = vmatprep.subr.mxu0 0.0
        %761 = vmatpush1.msra.mxu0 0.0
        %762 = vmatprep.subr.mxu0 0.0
        %763 = vmatpush1.msra.mxu0 0.0
        %764 = vmatprep.subr.mxu0 0.0
        %765 = vmatpush1.msra.mxu0 0.0
        %766 = vmatprep.subr.mxu0 0.0
        %767 = vmatpush1.msra.mxu0 0.0
        %768 = vmatprep.subr.mxu0 0.0
        %769 = vmatpush1.msra.mxu0 0.0
        %770 = vmatprep.subr.mxu0 0.0
        %771 = vmatpush1.msra.mxu0 0.0
        %772 = vmatprep.subr.mxu0 0.0
        %773 = vmatpush1.msra.mxu0 0.0
        %774 = vmatprep.subr.mxu0 0.0
        %775 = vmatpush1.msra.mxu0 0.0
        %776 = vmatprep.subr.mxu0 0.0
        %777 = vmatpush1.msra.mxu0 %v642
        %778 = vmatprep.subr.mxu0 0.0
        %779 = vmatpush1.msra.mxu0 %v641
        %780 = vmatprep.subr.mxu0 0.0
        %781 = vmatpush2.msra.mxu0 0.0
        %782 = vmatprep.subr.mxu0 0.0
        %783 = vmatpush2.msra.mxu0 0.0
        %784 = vmatprep.subr.mxu0 0.0
        %785 = vmatpush2.msra.mxu0 0.0
        %786 = vmatprep.subr.mxu0 0.0
        %787 = vmatpush2.msra.mxu0 0.0
        %788 = vmatprep.subr.mxu0 0.0
        %789 = vmatpush2.msra.mxu0 0.0
        %790 = vmatprep.subr.mxu0 0.0
        %791 = vmatpush2.msra.mxu0 0.0
        %792 = vmatprep.subr.mxu0 0.0
        %793 = vmatpush2.msra.mxu0 0.0
        %794 = vmatprep.subr.mxu0 0.0
        %795 = vmatpush2.msra.mxu0 0.0
        %796 = vmatprep.subr.mxu0 0.0
        %797 = vmatpush2.msra.mxu0 0.0
        %798 = vmatprep.subr.mxu0 0.0
        %799 = vmatpush2.msra.mxu0 0.0
        %800 = vmatprep.subr.mxu0 0.0
        %801 = vmatpush2.msra.mxu0 0.0
        %802 = vmatprep.subr.mxu0 0.0
        %803 = vmatpush2.msra.mxu0 0.0
        %804 = vmatprep.subr.mxu0 0.0
        %805 = vmatpush2.msra.mxu0 0.0
        %806 = vmatprep.subr.mxu0 0.0
        %807 = vmatpush2.msra.mxu0 0.0
        %808 = vmatprep.subr.mxu0 0.0
        %809 = vmatpush2.msra.mxu0 0.0
        %810 = vmatprep.subr.mxu0 0.0
        %811 = vmatpush2.msra.mxu0 0.0
        %812 = vmatprep.mubr.f32.mxu0 0.0
        %813 = vmatmul.mubr.f32.gmra.mxu0 %v746
        %v814 = vpop.f32.mrf.mxu0
        %v815 = vadd.f32 0.0, %v814
        %v816 = vpop.f32.mrf.mxu0
        %817 = vdwg.mxu0
        %v819 = vsel %vm744, %v743, 0
        %821 = vmatprep.subr.mxu0 0.0
        %822 = vmatpush1.msra.mxu0 0.0
        %823 = vmatprep.subr.mxu0 0.0
        %824 = vmatpush1.msra.mxu0 0.0
        %825 = vmatprep.subr.mxu0 0.0
        %826 = vmatpush1.msra.mxu0 0.0
        %827 = vmatprep.subr.mxu0 0.0
        %828 = vmatpush1.msra.mxu0 0.0
        %829 = vmatprep.subr.mxu0 0.0
        %830 = vmatpush1.msra.mxu0 0.0
        %831 = vmatprep.subr.mxu0 0.0
        %832 = vmatpush1.msra.mxu0 0.0
        %833 = vmatprep.subr.mxu0 0.0
        %834 = vmatpush1.msra.mxu0 0.0
        %835 = vmatprep.subr.mxu0 0.0
        %836 = vmatpush1.msra.mxu0 0.0
        %837 = vmatprep.subr.mxu0 0.0
        %838 = vmatpush1.msra.mxu0 0.0
        %839 = vmatprep.subr.mxu0 0.0
        %840 = vmatpush1.msra.mxu0 0.0
        %841 = vmatprep.subr.mxu0 0.0
        %842 = vmatpush1.msra.mxu0 0.0
        %843 = vmatprep.subr.mxu0 0.0
        %844 = vmatpush1.msra.mxu0 0.0
        %845 = vmatprep.subr.mxu0 0.0
        %846 = vmatpush1.msra.mxu0 0.0
        %847 = vmatprep.subr.mxu0 0.0
        %848 = vmatpush1.msra.mxu0 0.0
        %849 = vmatprep.subr.mxu0 0.0
        %850 = vmatpush1.msra.mxu0 %v644
        %851 = vmatprep.subr.mxu0 0.0
        %852 = vmatpush1.msra.mxu0 %v643
        %853 = vmatprep.subr.mxu0 0.0
        %854 = vmatpush2.msra.mxu0 0.0
        %855 = vmatprep.subr.mxu0 0.0
        %856 = vmatpush2.msra.mxu0 0.0
        %857 = vmatprep.subr.mxu0 0.0
        %858 = vmatpush2.msra.mxu0 0.0
        %859 = vmatprep.subr.mxu0 0.0
        %860 = vmatpush2.msra.mxu0 0.0
        %861 = vmatprep.subr.mxu0 0.0
        %862 = vmatpush2.msra.mxu0 0.0
        %863 = vmatprep.subr.mxu0 0.0
        %864 = vmatpush2.msra.mxu0 0.0
        %865 = vmatprep.subr.mxu0 0.0
        %866 = vmatpush2.msra.mxu0 0.0
        %867 = vmatprep.subr.mxu0 0.0
        %868 = vmatpush2.msra.mxu0 0.0
        %869 = vmatprep.subr.mxu0 0.0
        %870 = vmatpush2.msra.mxu0 0.0
        %871 = vmatprep.subr.mxu0 0.0
        %872 = vmatpush2.msra.mxu0 0.0
        %873 = vmatprep.subr.mxu0 0.0
        %874 = vmatpush2.msra.mxu0 0.0
        %875 = vmatprep.subr.mxu0 0.0
        %876 = vmatpush2.msra.mxu0 0.0
        %877 = vmatprep.subr.mxu0 0.0
        %878 = vmatpush2.msra.mxu0 0.0
        %879 = vmatprep.subr.mxu0 0.0
        %880 = vmatpush2.msra.mxu0 0.0
        %881 = vmatprep.subr.mxu0 0.0
        %882 = vmatpush2.msra.mxu0 0.0
        %883 = vmatprep.subr.mxu0 0.0
        %884 = vmatpush2.msra.mxu0 0.0
        %885 = vmatprep.mubr.f32.mxu0 0.0
        %886 = vmatmul.mubr.f32.gmra.mxu0 %v819
        %v887 = vpop.f32.mrf.mxu0
        %v888 = vadd.f32 0.0, %v887
        %v889 = vpop.f32.mrf.mxu0
        %890 = vdwg.mxu0
        %v891 = vmul.f32 %v815, %v740
        %v892 = vmul.f32 %v888, %v741
        %v893 = vsel %vm543, %v891, 0.0
        %v894 = vrot.slane %v893, 4
        %v895 = vadd.f32 %v893, %v894
        %v896 = vrot.slane %v895, 2
        %v897 = vadd.f32 %v895, %v896
        %v898 = vrot.slane %v897, 1
        %v899 = vadd.f32 %v897, %v898
        %v900 = vsel %vm543, %v892, 0.0
        %v901 = vrot.slane %v900, 4
        %v902 = vadd.f32 %v900, %v901
        %v903 = vrot.slane %v902, 2
        %v904 = vadd.f32 %v902, %v903
        %v905 = vrot.slane %v904, 1
        %v906 = vadd.f32 %v904, %v905
        %v907 = vld [vmem:[%s470] sm:$0xff]
        %v908 = vld [vmem:[%s470 + $0x8] sm:$0xff]
        %v909 = vld [vmem:[%s470 + $0x10] sm:$0xff]
        %v910 = vld [vmem:[%s470 + $0x18] sm:$0xff]
        %s911 = scalar_lea.vmem %s8, %s28
        %v912 = vld [vmem:[%s911] sm:$0x1]
        %v914 = vlaneseq
        %v915 = vshrl.u32 %v914, 7
        %v916 = vsub.s32 0, %v915
        %v917 = vrot.slane %v912, %v916
        %vm921 = vcmask 1041409
        %v922 = vsel %vm921, %v906, %v899
        %v923 = vsel %vm543, %v922, 0
        %925 = vmatprep.subr.mxu0 0.0
        %926 = vmatpush1.msra.mxu0 0.0
        %927 = vmatprep.subr.mxu0 0.0
        %928 = vmatpush1.msra.mxu0 0.0
        %929 = vmatprep.subr.mxu0 0.0
        %930 = vmatpush1.msra.mxu0 0.0
        %931 = vmatprep.subr.mxu0 0.0
        %932 = vmatpush1.msra.mxu0 0.0
        %933 = vmatprep.subr.mxu0 0.0
        %934 = vmatpush1.msra.mxu0 0.0
        %935 = vmatprep.subr.mxu0 0.0
        %936 = vmatpush1.msra.mxu0 0.0
        %937 = vmatprep.subr.mxu0 0.0
        %938 = vmatpush1.msra.mxu0 0.0
        %939 = vmatprep.subr.mxu0 0.0
        %940 = vmatpush1.msra.mxu0 0.0
        %941 = vmatprep.subr.mxu0 0.0
        %942 = vmatpush1.msra.mxu0 0.0
        %943 = vmatprep.subr.mxu0 0.0
        %944 = vmatpush1.msra.mxu0 0.0
        %945 = vmatprep.subr.mxu0 0.0
        %946 = vmatpush1.msra.mxu0 0.0
        %947 = vmatprep.subr.mxu0 0.0
        %948 = vmatpush1.msra.mxu0 0.0
        %949 = vmatprep.subr.mxu0 0.0
        %950 = vmatpush1.msra.mxu0 %v910
        %951 = vmatprep.subr.mxu0 0.0
        %952 = vmatpush1.msra.mxu0 %v909
        %953 = vmatprep.subr.mxu0 0.0
        %954 = vmatpush1.msra.mxu0 %v908
        %955 = vmatprep.subr.mxu0 0.0
        %956 = vmatpush1.msra.mxu0 %v907
        %957 = vmatprep.subr.mxu0 0.0
        %958 = vmatpush2.msra.mxu0 0.0
        %959 = vmatprep.subr.mxu0 0.0
        %960 = vmatpush2.msra.mxu0 0.0
        %961 = vmatprep.subr.mxu0 0.0
        %962 = vmatpush2.msra.mxu0 0.0
        %963 = vmatprep.subr.mxu0 0.0
        %964 = vmatpush2.msra.mxu0 0.0
        %965 = vmatprep.subr.mxu0 0.0
        %966 = vmatpush2.msra.mxu0 0.0
        %967 = vmatprep.subr.mxu0 0.0
        %968 = vmatpush2.msra.mxu0 0.0
        %969 = vmatprep.subr.mxu0 0.0
        %970 = vmatpush2.msra.mxu0 0.0
        %971 = vmatprep.subr.mxu0 0.0
        %972 = vmatpush2.msra.mxu0 0.0
        %973 = vmatprep.subr.mxu0 0.0
        %974 = vmatpush2.msra.mxu0 0.0
        %975 = vmatprep.subr.mxu0 0.0
        %976 = vmatpush2.msra.mxu0 0.0
        %977 = vmatprep.subr.mxu0 0.0
        %978 = vmatpush2.msra.mxu0 0.0
        %979 = vmatprep.subr.mxu0 0.0
        %980 = vmatpush2.msra.mxu0 0.0
        %981 = vmatprep.subr.mxu0 0.0
        %982 = vmatpush2.msra.mxu0 0.0
        %983 = vmatprep.subr.mxu0 0.0
        %984 = vmatpush2.msra.mxu0 0.0
        %985 = vmatprep.subr.mxu0 0.0
        %986 = vmatpush2.msra.mxu0 0.0
        %987 = vmatprep.subr.mxu0 0.0
        %988 = vmatpush2.msra.mxu0 0.0
        %989 = vmatprep.mubr.f32.mxu0 0.0
        %990 = vmatmul.mubr.f32.gmra.mxu0 %v923
        %v991 = vpop.f32.mrf.mxu0
        %v992 = vadd.f32 %v917, %v991
        %v993 = vpop.f32.mrf.mxu0
        %994 = vdwg.mxu0
        %v995 = vld [vmem:[#allocation2] sm:$0xff]
        %v996 = vld [vmem:[#allocation2 + $0x8] sm:$0xff]
        %v999 = vunpack.c.l.s4 1966171168
        %v1000 = vunpack.c.0.s8 %v999
        %v1001 = vlaneseq
        %v1002 = vshrl.u32 %v1001, 7
        %v1003 = vsub.s32 %v1000, %v1002
        %v1004 = vrot.slane %v992, %v1003
        %v1005 = vcombine.high %v1004, %v1004
        %v1007 = vunpack.c.l.s4 1966171168
        %v1008 = vunpack.c.0.s8 %v1007
        %v1009 = vlaneseq
        %v1010 = vshrl.u32 %v1009, 7
        %v1011 = vsub.s32 %v1008, %v1010
        %v1012 = vrot.slane %v1004, %v1011
        %v1014 = vunpack.c.l.s4 1966171168
        %v1015 = vunpack.c.0.s8 %v1014
        %v1016 = vlaneseq
        %v1017 = vshrl.u32 %v1016, 7
        %v1018 = vsub.s32 %v1015, %v1017
        %v1019 = vrot.slane %v1005, %v1018
        %v1020 = vlaneseq
        %v1021 = vshrl.u32 %v1020, 7
        %v1022 = vsub.s32 0, %v1021
        %v1023 = vrot.slane %v1012, %v1022
        %v1024 = vlaneseq
        %v1025 = vshrl.u32 %v1024, 7
        %v1026 = vsub.s32 0, %v1025
        %v1027 = vrot.slane %v1019, %v1026
        %v1030 = vadd.f32 %v995, %v1023
        %v1031 = vadd.f32 %v996, %v1027
        %1032 = vst.msk [vmem:[#allocation2] sm:$0xff] %vm543, %v1030
        %1033 = vst.msk [vmem:[#allocation2 + $0x8] sm:$0xff] %vm543, %v1031
        %p1034 = scmp.eq.s32.totalorder %s28, 1
        // Predicated region
        $region85: #{tpu_custom_call.1} parent=55 // pred_check
          %p1035 = pneg %p1034
        $region86: #{tpu_custom_call.1} parent=55 // pred_check_branch
          %1037 = sbr.rel (%p1035) target = $region88
        $region87: #{tpu_custom_call.1} parent=55 // pred_region
          %v1038 = vld [vmem:[#allocation2] sm:$0xff]
          %v1039 = vld [vmem:[#allocation2 + $0x8] sm:$0xff]
          %v1040 = vlaneseq
          %v1041 = vshrl.u32 %v1040, 7
          %vm1042 = vcmp.lt.s32.totalorder %v1041, 6
          %v1043 = vsel %vm1042, 1, 0
          %vm1044 = vcmp.eq.s32.totalorder %v1043, 1
          %v1045 = vsel %vm1044, %v1038, 0.0
          %v1046 = vsel %vm1044, %v1039, 0.0
          %v1047 = vsel %vm543, %v1045, 0.0
          %v1048 = vrot.slane %v1047, 4
          %v1049 = vadd.f32 %v1047, %v1048
          %v1050 = vrot.slane %v1049, 2
          %v1051 = vadd.f32 %v1049, %v1050
          %v1052 = vrot.slane %v1051, 1
          %v1053 = vadd.f32 %v1051, %v1052
          %v1054 = vsel %vm543, %v1046, 0.0
          %v1055 = vrot.slane %v1054, 4
          %v1056 = vadd.f32 %v1054, %v1055
          %v1057 = vrot.slane %v1056, 2
          %v1058 = vadd.f32 %v1056, %v1057
          %v1059 = vrot.slane %v1058, 1
          %v1060 = vadd.f32 %v1058, %v1059
          %v1063 = vsel %vm921, %v1060, %v1053
          %vm1065 = vcmask 254976
          %1066 = vst.msk [vmem:[#allocation12] sm:$0x3] %vm1065, %v1063
        $region88: #{tpu_custom_call.1} parent=55 // pred_fallthru
          _
        // Predicated region
        $region89: #{tpu_custom_call.1} parent=55 // pred_check
          %p1067 = pneg %p274
        $region90: #{tpu_custom_call.1} parent=55 // pred_check_branch
          %1069 = sbr.rel (%p1067) target = $region92
        $region91: #{tpu_custom_call.1} parent=55 // pred_region
          %s1071 = ssub.s32 32, 32
          %1072 = vsyncadd [#allocation5], %s1071
          %s1073 = smul.addr %s27, 32
          %s1074 = scalar_lea.hbm %s9, %s1073
          %s1076 = sshll.u32 [#allocation12], 4
          %s1077 = int_to_ptr.vmem [resolvable:$true] %s1076
          %1079 = dma.vmem_to_hbm [thread:$0]  %s1077, 32, %s1074, [#allocation5]
        $region92: #{tpu_custom_call.1} parent=55 // pred_fallthru
          _
        // Predicated region
        $region93: #{tpu_custom_call.1} parent=55 // pred_check
          %p1080 = pneg %p274
        $region94: #{tpu_custom_call.1} parent=55 // pred_check_branch
          %1082 = sbr.rel (%p1080) target = $region96
        $region95: #{tpu_custom_call.1} parent=55 // pred_region
          %1083 = dma.done [#allocation5], 32
        $region96: #{tpu_custom_call.1} parent=55 // pred_fallthru
          _
      $region56: #{tpu_custom_call.1} parent=5 // pred_fallthru
        _
      %p1084 = scmp.le.s32.totalorder 2, %s18
      // Predicated region
      $region97: #{tpu_custom_call.1} parent=5 // pred_check
        %p1085 = pneg %p1084
      $region98: #{tpu_custom_call.1} parent=5 // pred_check_branch
        %1087 = sbr.rel (%p1085) target = $region100
      $region99: #{tpu_custom_call.1} parent=5 // pred_region
        %s1088 = ssub.s32 %s18, 2
      $region100: #{tpu_custom_call.1} parent=5 // pred_fallthru
        _
    $region6: #{tpu_custom_call.1} parent=1 // loop_footer
      %s22 = sadd.s32 1, %s18
    $region7: #{tpu_custom_call.1} parent=1 // loop_footer_branch
      %17 = sbr.rel target = $region3
    $region8: #{tpu_custom_call.1} parent=1 // loop_exit
      _
    %1089 = vsyncpa [#allocation4], 1
    %s1090 = scalar_lea.sflag [#allocation4], 1
    %1091 = vsyncpa %s1090, 1
    %1092 = vsyncpa [#allocation7], 1
    %1093 = vsyncpa [#allocation5], 1
    %s1094 = scalar_lea.sflag [#allocation5], 1
    %1095 = vsyncpa %s1094, 1

</llo_original>
